<compile_context>
chip_gen: v7x
topology: tpu7x:2x2x1
jax: 0.10.0
libtpu: 0.0.40
codegen_flags: <defaults>
</compile_context>

<pallas_src>
import functools

import jax
import jax.numpy as jnp
from jax.experimental import pallas as pl
from jax.experimental.pallas import tpu as pltpu


def _round8(n):
    return -(-n // 8) * 8


def _stable_gnn_kernel(hidden_dim, bn, scale_factor, offs,
                       z_ref, slab_ref, out_ref):
    H = hidden_dim
    D2 = 2 * H
    off_w1, off_w2, off_ws, off_vec, off_adj = offs

    z = z_ref[...]                                    # (BN, 2H) f32
    x = z[:, :H]                                      # state part (decay target)

    # Static slices of the packed parameter slab (all f32, all start at lane 0).
    w1 = slab_ref[off_w1:off_w1 + D2, 0:H]            # (2H, H)
    w2 = slab_ref[off_w2:off_w2 + H, 0:H]             # (H, H)
    w_stack = slab_ref[off_ws:off_ws + D2, 0:D2]      # (2H, 2H)
    b1 = slab_ref[off_vec + 0:off_vec + 1, 0:H]
    gamma = slab_ref[off_vec + 1:off_vec + 2, 0:H]
    beta = slab_ref[off_vec + 2:off_vec + 3, 0:H]
    b2 = slab_ref[off_vec + 3:off_vec + 4, 0:H]
    b_heads = slab_ref[off_vec + 4:off_vec + 5, 0:D2]
    adjp = slab_ref[off_adj:off_adj + bn, 0:bn]       # I + c*blockdiag(adj)

    # gnn_layer[0]: Linear(2H -> H)
    h = jnp.dot(z, w1, preferred_element_type=jnp.float32) + b1

    # gnn_layer[1]: LayerNorm(H), eps = 1e-5 (PyTorch default), f32 math
    mean = jnp.mean(h, axis=-1, keepdims=True)
    var = jnp.mean(jnp.square(h - mean), axis=-1, keepdims=True)
    h = (h - mean) * jax.lax.rsqrt(var + 1e-5) * gamma + beta

    # gnn_layer[2]: ReLU ; gnn_layer[3]: Linear(H -> H)
    h = jnp.maximum(h, 0.0)
    t = jnp.dot(h, w2, preferred_element_type=jnp.float32) + b2

    # F.normalize(p=2, dim=-1) * sqrt(H)   (norm clamped at 1e-12)
    ssq = jnp.sum(t * t, axis=-1, keepdims=True)
    t = t * (jax.lax.rsqrt(jnp.maximum(ssq, 1e-24)) * (float(H) ** 0.5))

    # common = t + diffusion * blockdiag(adj) @ t, folded into one static matmul
    common = jnp.dot(adjp, t, preferred_element_type=jnp.float32)

    # Fused dx/dm heads in ONE matmul:
    #   [dx | dm] = tanh([common | x] @ [[Wdx|Wdm],[-decay*Wdx|0]] + [bdx|bdm])
    lhs = jnp.concatenate([common, x], axis=-1)       # (BN, 2H)
    pre = jnp.dot(lhs, w_stack, preferred_element_type=jnp.float32) + b_heads
    dz = jnp.tanh(pre)
    if scale_factor != 1.0:
        dz = dz * scale_factor

    # norm clipping: scale = clamp(5.0 / (||dz|| + 1e-8), max=1.0)
    nrm = jnp.sqrt(jnp.sum(dz * dz, axis=-1, keepdims=True))
    dz = dz * jnp.minimum(5.0 / (nrm + 1e-8), 1.0)

    # torch.nan_to_num (NaN only; dz is tanh-bounded so +/-inf cannot occur)
    dz = jnp.where(jnp.isnan(dz), 0.0, dz)

    out_ref[...] = dz.astype(out_ref.dtype)


def make_stable_gnn_func(adj, params, *, hidden_dim, batch_size,
                         diffusion_coef=0.02, decay_coef=0.03, scale_factor=1.0):
    """Pack all static operands once and return a jitted callable f(z).

    z: (batch_size, N, 2*hidden_dim) f32.  Returns dz/dt of the same shape.
    """
    H = hidden_dim
    D2 = 2 * H
    N = adj.shape[0]
    BN = batch_size * N
    f32 = jnp.float32

    w1, b1, g, be, w2, b2, wdx, bdx, wdm, bdm = params

    # Stacked fused head weight (2H, 2H): rows 0:H = [Wdx | Wdm],
    # rows H:2H = [-decay*Wdx | 0] (decay folded in f32).
    w_stack = jnp.concatenate(
        [jnp.concatenate([wdx, wdm], axis=1),
         jnp.concatenate([-decay_coef * wdx, jnp.zeros_like(wdm)], axis=1)],
        axis=0).astype(f32)
    b_heads = jnp.concatenate(
        [bdx.reshape(1, H), bdm.reshape(1, H)], axis=1).astype(f32)

    # Six small per-lane vectors packed into one (8, 2H) block.
    def _pad_h(v):
        return jnp.concatenate(
            [v.reshape(1, H).astype(f32), jnp.zeros((1, H), f32)], axis=1)

    vec_pack = jnp.concatenate(
        [_pad_h(b1), _pad_h(g), _pad_h(be), _pad_h(b2),
         b_heads, jnp.zeros((3, D2), f32)], axis=0)                  # (8, 2H)

    # Folded adjacency (static, f32): I_BN + diffusion * blockdiag_B(adj).
    adj_block = jnp.kron(jnp.eye(batch_size, dtype=f32), adj.astype(f32))
    adjp = jnp.eye(BN, dtype=f32) + diffusion_coef * adj_block

    # Single pre-padded 128-lane parameter slab; blocks start at 8-aligned rows.
    lanes = -(-max(D2, BN) // 128) * 128
    off_w1 = 0
    off_w2 = off_w1 + _round8(D2)
    off_ws = off_w2 + _round8(H)
    off_vec = off_ws + _round8(D2)
    off_adj = off_vec + 8
    rows = off_adj + _round8(BN)

    slab = jnp.zeros((rows, lanes), f32)
    slab = slab.at[off_w1:off_w1 + D2, 0:H].set(w1.astype(f32))
    slab = slab.at[off_w2:off_w2 + H, 0:H].set(w2.astype(f32))
    slab = slab.at[off_ws:off_ws + D2, 0:D2].set(w_stack)
    slab = slab.at[off_vec:off_vec + 8, 0:D2].set(vec_pack)
    slab = slab.at[off_adj:off_adj + BN, 0:BN].set(adjp)

    kernel = functools.partial(
        _stable_gnn_kernel, H, BN, float(scale_factor),
        (off_w1, off_w2, off_ws, off_vec, off_adj))

    cost = pl.CostEstimate(
        flops=2 * BN * (D2 * H + H * H + BN * H + D2 * D2),
        transcendentals=BN * D2 + 2 * BN,
        bytes_accessed=4 * (2 * BN * D2 + rows * lanes))

    vmem = pltpu.MemorySpace.VMEM
    call = pl.pallas_call(
        kernel,
        out_shape=jax.ShapeDtypeStruct((BN, D2), jnp.float32),
        in_specs=[pl.BlockSpec(memory_space=vmem),      # z (flattened batch*nodes)
                  pl.BlockSpec(memory_space=vmem)],     # packed parameter slab
        out_specs=pl.BlockSpec(memory_space=vmem),
        cost_estimate=cost,
    )

    @jax.jit
    def func(z):
        b, n, d2 = z.shape
        out2 = call(z.reshape(BN, D2).astype(jnp.float32), slab)
        return out2.reshape(b, n, d2)

    return func


def _reference(z, adj, params, hidden_dim):
    """Pure-JAX reference mirroring the PyTorch forward."""
    H = hidden_dim
    w1, b1, g, be, w2, b2, wdx, bdx, wdm, bdm = params
    x = z[:, :, :H]
    h = z @ w1 + b1
    mean = h.mean(-1, keepdims=True)
    var = ((h - mean) ** 2).mean(-1, keepdims=True)
    h = (h - mean) / jnp.sqrt(var + 1e-5) * g + be
    h = jnp.maximum(h, 0.0)
    t = h @ w2 + b2
    t = t / jnp.maximum(jnp.linalg.norm(t, axis=-1, keepdims=True), 1e-12) * jnp.sqrt(H * 1.0)
    nb = jnp.einsum("ij,bjh->bih", adj, t)
    dx = jnp.tanh((t + 0.02 * nb - 0.03 * x) @ wdx + bdx)
    dm = jnp.tanh((t + 0.02 * nb) @ wdm + bdm)
    dz = jnp.concatenate([dx, dm], axis=-1)
    nrm = jnp.linalg.norm(dz, axis=-1, keepdims=True)
    scale = jnp.minimum(5.0 / (nrm + 1e-8), 1.0)
    return dz * scale


if __name__ == "__main__":
    B, N, H = 2, 8, 32   # batch, num_nodes, hidden_dim

    key = jax.random.PRNGKey(0)
    keys = jax.random.split(key, 12)

    # Deterministic synthetic parameters (PyTorch Linear weights stored
    # pre-transposed as (in, out)).
    w1 = jax.random.normal(keys[0], (2 * H, H), jnp.float32) * (1.0 / jnp.sqrt(2 * H))
    b1 = jax.random.normal(keys[1], (1, H), jnp.float32) * 0.01
    g = jnp.ones((1, H), jnp.float32)
    be = jnp.zeros((1, H), jnp.float32)
    w2 = jax.random.normal(keys[2], (H, H), jnp.float32) * (1.0 / jnp.sqrt(H))
    b2 = jax.random.normal(keys[3], (1, H), jnp.float32) * 0.01
    wdx = jax.random.normal(keys[4], (H, H), jnp.float32) * (1.0 / jnp.sqrt(H))
    bdx = jax.random.normal(keys[5], (1, H), jnp.float32) * 0.01
    wdm = jax.random.normal(keys[6], (H, H), jnp.float32) * (1.0 / jnp.sqrt(H))
    bdm = jax.random.normal(keys[7], (1, H), jnp.float32) * 0.01
    params = (w1, b1, g, be, w2, b2, wdx, bdx, wdm, bdm)

    # Symmetric 0/1 adjacency (register_buffer in the torch module).
    adj = (jax.random.uniform(keys[8], (N, N), jnp.float32) > 0.5).astype(jnp.float32)
    adj = jnp.maximum(adj, adj.T)

    # Inputs: z = cat([x, m], -1), shape (B, N, 2H). (t is unused in forward.)
    z = jax.random.normal(keys[9], (B, N, 2 * H), jnp.float32)

    func = make_stable_gnn_func(adj, params, hidden_dim=H, batch_size=B)
    out = jax.block_until_ready(func(z))

    ref = _reference(z, adj, params, H)
    assert out.shape == (B, N, 2 * H)
    err = jnp.max(jnp.abs(out - ref))
    assert jnp.allclose(out, ref, atol=3e-5, rtol=3e-5), f"max abs err = {err}"

    print("KERNEL_OK")
</pallas_src>

<mosaic_0001>
module attributes {stable_mosaic.version = 11 : i64} {
  func.func @_stable_gnn_kernel(%arg0: memref<16x64xf32, #tpu.memory_space<vmem>>, %arg1: memref<184x128xf32, #tpu.memory_space<vmem>>, %arg2: memref<16x64xf32, #tpu.memory_space<vmem>>) attributes {dimension_semantics = [], scalar_prefetch = 0 : i64, scratch_operands = 0 : i64, tpu.core_type = #tpu.core_type<tc>} {
    %c0 = arith.constant 0 : index
    %c0_0 = arith.constant 0 : index
    %0 = vector.load %arg0[%c0, %c0_0] : memref<16x64xf32, #tpu.memory_space<vmem>>, vector<16x64xf32>
    %1 = vector.extract_strided_slice %0 {offsets = [0, 0], sizes = [16, 32], strides = [1, 1]} : vector<16x64xf32> to vector<16x32xf32>
    %c0_1 = arith.constant 0 : index
    %c0_2 = arith.constant 0 : index
    %2 = vector.load %arg1[%c0_1, %c0_2] : memref<184x128xf32, #tpu.memory_space<vmem>>, vector<64x32xf32>
    %c64 = arith.constant 64 : index
    %c0_3 = arith.constant 0 : index
    %3 = vector.load %arg1[%c64, %c0_3] : memref<184x128xf32, #tpu.memory_space<vmem>>, vector<32x32xf32>
    %c96 = arith.constant 96 : index
    %c0_4 = arith.constant 0 : index
    %4 = vector.load %arg1[%c96, %c0_4] : memref<184x128xf32, #tpu.memory_space<vmem>>, vector<64x64xf32>
    %c160 = arith.constant 160 : index
    %c0_5 = arith.constant 0 : index
    %5 = vector.load %arg1[%c160, %c0_5] : memref<184x128xf32, #tpu.memory_space<vmem>>, vector<1x32xf32>
    %c161 = arith.constant 161 : index
    %c0_6 = arith.constant 0 : index
    %6 = vector.load %arg1[%c161, %c0_6] : memref<184x128xf32, #tpu.memory_space<vmem>>, vector<1x32xf32>
    %c162 = arith.constant 162 : index
    %c0_7 = arith.constant 0 : index
    %7 = vector.load %arg1[%c162, %c0_7] : memref<184x128xf32, #tpu.memory_space<vmem>>, vector<1x32xf32>
    %c163 = arith.constant 163 : index
    %c0_8 = arith.constant 0 : index
    %8 = vector.load %arg1[%c163, %c0_8] : memref<184x128xf32, #tpu.memory_space<vmem>>, vector<1x32xf32>
    %c164 = arith.constant 164 : index
    %c0_9 = arith.constant 0 : index
    %9 = vector.load %arg1[%c164, %c0_9] : memref<184x128xf32, #tpu.memory_space<vmem>>, vector<1x64xf32>
    %c168 = arith.constant 168 : index
    %c0_10 = arith.constant 0 : index
    %10 = vector.load %arg1[%c168, %c0_10] : memref<184x128xf32, #tpu.memory_space<vmem>>, vector<16x16xf32>
    %cst = arith.constant dense<0.000000e+00> : vector<16x32xf32>
    %11 = tpu.matmul %0, %2, %cst {dimension_numbers = #tpu.dot_dimension_numbers<[1], [0], [0], [1], [0, 0, 1, 1], [], []>} : vector<16x64xf32>, vector<64x32xf32>, vector<16x32xf32> -> vector<16x32xf32>
    %12 = vector.broadcast %5 : vector<1x32xf32> to vector<16x32xf32>
    %13 = arith.addf %11, %12 : vector<16x32xf32>
    %cst_11 = arith.constant dense<0.000000e+00> : vector<16xf32>
    %14 = vector.multi_reduction <add>, %13, %cst_11 [1] : vector<16x32xf32> to vector<16xf32>
    %15 = vector.shape_cast %14 : vector<16xf32> to vector<16x1xf32>
    %cst_12 = arith.constant 3.200000e+01 : f32
    %16 = vector.broadcast %cst_12 : f32 to vector<16x1xf32>
    %17 = arith.divf %15, %16 : vector<16x1xf32>
    %18 = vector.broadcast %17 : vector<16x1xf32> to vector<16x32xf32>
    %19 = arith.subf %13, %18 : vector<16x32xf32>
    %20 = arith.mulf %19, %19 : vector<16x32xf32>
    %cst_13 = arith.constant dense<0.000000e+00> : vector<16xf32>
    %21 = vector.multi_reduction <add>, %20, %cst_13 [1] : vector<16x32xf32> to vector<16xf32>
    %22 = vector.shape_cast %21 : vector<16xf32> to vector<16x1xf32>
    %cst_14 = arith.constant 3.200000e+01 : f32
    %23 = vector.broadcast %cst_14 : f32 to vector<16x1xf32>
    %24 = arith.divf %22, %23 : vector<16x1xf32>
    %25 = vector.broadcast %17 : vector<16x1xf32> to vector<16x32xf32>
    %26 = arith.subf %13, %25 : vector<16x32xf32>
    %cst_15 = arith.constant 9.99999974E-6 : f32
    %27 = vector.broadcast %cst_15 : f32 to vector<16x1xf32>
    %28 = arith.addf %24, %27 : vector<16x1xf32>
    %29 = math.rsqrt %28 : vector<16x1xf32>
    %30 = vector.broadcast %29 : vector<16x1xf32> to vector<16x32xf32>
    %31 = arith.mulf %26, %30 : vector<16x32xf32>
    %32 = vector.broadcast %6 : vector<1x32xf32> to vector<16x32xf32>
    %33 = arith.mulf %31, %32 : vector<16x32xf32>
    %34 = vector.broadcast %7 : vector<1x32xf32> to vector<16x32xf32>
    %35 = arith.addf %33, %34 : vector<16x32xf32>
    %cst_16 = arith.constant 0.000000e+00 : f32
    %36 = vector.broadcast %cst_16 : f32 to vector<16x32xf32>
    %37 = arith.maximumf %35, %36 : vector<16x32xf32>
    %cst_17 = arith.constant dense<0.000000e+00> : vector<16x32xf32>
    %38 = tpu.matmul %37, %3, %cst_17 {dimension_numbers = #tpu.dot_dimension_numbers<[1], [0], [0], [1], [0, 0, 1, 1], [], []>} : vector<16x32xf32>, vector<32x32xf32>, vector<16x32xf32> -> vector<16x32xf32>
    %39 = vector.broadcast %8 : vector<1x32xf32> to vector<16x32xf32>
    %40 = arith.addf %38, %39 : vector<16x32xf32>
    %41 = arith.mulf %40, %40 : vector<16x32xf32>
    %cst_18 = arith.constant dense<0.000000e+00> : vector<16xf32>
    %42 = vector.multi_reduction <add>, %41, %cst_18 [1] : vector<16x32xf32> to vector<16xf32>
    %43 = vector.shape_cast %42 : vector<16xf32> to vector<16x1xf32>
    %cst_19 = arith.constant 1.000000e-24 : f32
    %44 = vector.broadcast %cst_19 : f32 to vector<16x1xf32>
    %45 = arith.maximumf %43, %44 : vector<16x1xf32>
    %46 = math.rsqrt %45 : vector<16x1xf32>
    %cst_20 = arith.constant 5.65685415 : f32
    %47 = vector.broadcast %cst_20 : f32 to vector<16x1xf32>
    %48 = arith.mulf %46, %47 : vector<16x1xf32>
    %49 = vector.broadcast %48 : vector<16x1xf32> to vector<16x32xf32>
    %50 = arith.mulf %40, %49 : vector<16x32xf32>
    %cst_21 = arith.constant dense<0.000000e+00> : vector<16x32xf32>
    %51 = tpu.matmul %10, %50, %cst_21 {dimension_numbers = #tpu.dot_dimension_numbers<[1], [0], [0], [1], [0, 0, 1, 1], [], []>} : vector<16x16xf32>, vector<16x32xf32>, vector<16x32xf32> -> vector<16x32xf32>
    %52 = tpu.concatenate %51, %1 in 1 : vector<16x32xf32>, vector<16x32xf32> -> vector<16x64xf32>
    %cst_22 = arith.constant dense<0.000000e+00> : vector<16x64xf32>
    %53 = tpu.matmul %52, %4, %cst_22 {dimension_numbers = #tpu.dot_dimension_numbers<[1], [0], [0], [1], [0, 0, 1, 1], [], []>} : vector<16x64xf32>, vector<64x64xf32>, vector<16x64xf32> -> vector<16x64xf32>
    %54 = vector.broadcast %9 : vector<1x64xf32> to vector<16x64xf32>
    %55 = arith.addf %53, %54 : vector<16x64xf32>
    %56 = math.tanh %55 : vector<16x64xf32>
    %57 = arith.mulf %56, %56 : vector<16x64xf32>
    %cst_23 = arith.constant dense<0.000000e+00> : vector<16xf32>
    %58 = vector.multi_reduction <add>, %57, %cst_23 [1] : vector<16x64xf32> to vector<16xf32>
    %59 = vector.shape_cast %58 : vector<16xf32> to vector<16x1xf32>
    %60 = math.sqrt %59 : vector<16x1xf32>
    %cst_24 = arith.constant 9.99999993E-9 : f32
    %61 = vector.broadcast %cst_24 : f32 to vector<16x1xf32>
    %62 = arith.addf %60, %61 : vector<16x1xf32>
    %cst_25 = arith.constant 5.000000e+00 : f32
    %63 = vector.broadcast %cst_25 : f32 to vector<16x1xf32>
    %64 = arith.divf %63, %62 : vector<16x1xf32>
    %cst_26 = arith.constant 1.000000e+00 : f32
    %65 = vector.broadcast %cst_26 : f32 to vector<16x1xf32>
    %66 = arith.minimumf %64, %65 : vector<16x1xf32>
    %67 = vector.broadcast %66 : vector<16x1xf32> to vector<16x64xf32>
    %68 = arith.mulf %56, %67 : vector<16x64xf32>
    %69 = arith.cmpf one, %68, %68 : vector<16x64xf32>
    %cst_27 = arith.constant 0.000000e+00 : f32
    %70 = vector.broadcast %cst_27 : f32 to vector<16x64xf32>
    %71 = arith.select %69, %70, %68 : vector<16x64xi1>, vector<16x64xf32>
    %c0_28 = arith.constant 0 : index
    %c0_29 = arith.constant 0 : index
    %72 = vector.load %arg2[%c0_28, %c0_29] : memref<16x64xf32, #tpu.memory_space<vmem>>, vector<16x64xf32>
    tpu.vector_store %arg2[%c0_28, %c0_29], %71 {strides = array<i32>} : memref<16x64xf32, #tpu.memory_space<vmem>>, vector<16x64xf32>,
    return
  }
}

</mosaic_0001>

<llo_original>
// kernel: func.1
$region0: #{func.1}
  #allocation0 [shape = 'u32[]', space=smem, size = 0x4, offset = 0x4, fixed_abs, tag = 'smem constant byte address 0x4 - core index']
  #allocation1 [shape = 'u32[144,128]{1,0:T(1,128)}', space=vmem, size = 0x12000, scoped, tag = 'internal scratch']
  %s0 = inlined_call_operand.hbm [shape: f32[16,64], index: 0, kind: input, shape index: {}]
  %s1 = inlined_call_operand.hbm [shape: f32[184,128], index: 1, kind: input, shape index: {}]
  %s2 = inlined_call_operand.hbm [shape: f32[16,64], index: 2, kind: output, shape index: {}]
  %s3 = sld [smem:[#allocation0]]
  $region26: #{func.1} parent=0
    _
  %s5 = ssub.s32 1, %s3
  %s6 = scalar_select 0, %s5, %s3
  $region1: #{func.1} parent=0
    #allocation2 [shape = 'u8[8192]{0}', space=vmem, size = 0x2000, scoped, tag = 'input window, operand 0, single buffered']
    #allocation3 [shape = 's32[1]{0}', space=sflag, size = 0x4, scoped, tag = 'scoped memory for func.1']
    #allocation4 [shape = 's32[1]{0}', space=sflag, size = 0x4, scoped, tag = 'scoped memory for func.1']
    #allocation5 [shape = 'u8[94208]{0}', space=vmem, size = 0x17000, scoped, tag = 'input window, operand 1, single buffered']
    #allocation6 [shape = 's32[1]{0}', space=sflag, size = 0x4, scoped, tag = 'scoped memory for func.1']
    #allocation7 [shape = 'u8[8192]{0}', space=vmem, size = 0x2000, scoped, tag = 'output window, operand 0, single buffered']
    %7 = vsyncpa [#allocation3], 0
    %8 = vsyncpa [#allocation6], 0
    %9 = vsyncpa [#allocation4], 0
    // Predicated region
    $region2: #{func.1} parent=1 // pred_check
      _
    $region3: #{func.1} parent=1 // pred_check_branch
      %11 = sbr.rel (0) target = $region5
    $region4: #{func.1} parent=1 // pred_region
      %s13 = ssub.s32 256, 256
      %14 = vsyncadd [#allocation3], %s13
      %s15 = sshll.u32 [#allocation2], 4
      %s16 = int_to_ptr.vmem [resolvable:$true] %s15
      %21 = dma.hbm_to_vmem [thread:$0]  %s0, 256, %s16, [#allocation3], 128, 128, 8
    $region5: #{func.1} parent=1 // pred_fallthru
      _
    // Predicated region
    $region6: #{func.1} parent=1 // pred_check
      _
    $region7: #{func.1} parent=1 // pred_check_branch
      %23 = sbr.rel (0) target = $region9
    $region8: #{func.1} parent=1 // pred_region
      %s25 = ssub.s32 2944, 2944
      %26 = vsyncadd [#allocation6], %s25
      %s27 = sshll.u32 [#allocation5], 4
      %s28 = int_to_ptr.vmem [resolvable:$true] %s27
      %33 = dma.hbm_to_vmem [thread:$0]  %s1, 2944, %s28, [#allocation6], 128, 128, 8
    $region9: #{func.1} parent=1 // pred_fallthru
      _
    // Predicated region
    $region10: #{func.1} parent=1 // pred_check
      _
    $region11: #{func.1} parent=1 // pred_check_branch
      %35 = sbr.rel (0) target = $region13
    $region12: #{func.1} parent=1 // pred_region
      %36 = dma.done [#allocation3], 256
    $region13: #{func.1} parent=1 // pred_fallthru
      _
    // Predicated region
    $region14: #{func.1} parent=1 // pred_check
      _
    $region15: #{func.1} parent=1 // pred_check_branch
      %38 = sbr.rel (0) target = $region17
    $region16: #{func.1} parent=1 // pred_region
      %39 = dma.done [#allocation6], 2944
    $region17: #{func.1} parent=1 // pred_fallthru
      _
    %v40 = vld [vmem:[#allocation2] sm:$0xff]
    %v41 = vld [vmem:[#allocation2 + $0x8] sm:$0xff]
    %v42 = vld [vmem:[#allocation5] sm:$0xff]
    %v43 = vld [vmem:[#allocation5 + $0x8] sm:$0xff]
    %v44 = vld [vmem:[#allocation5 + $0x10] sm:$0xff]
    %v45 = vld [vmem:[#allocation5 + $0x18] sm:$0xff]
    %v46 = vld [vmem:[#allocation5 + $0x20] sm:$0xff]
    %v47 = vld [vmem:[#allocation5 + $0x28] sm:$0xff]
    %v48 = vld [vmem:[#allocation5 + $0x30] sm:$0xff]
    %v49 = vld [vmem:[#allocation5 + $0x38] sm:$0xff]
    %v50 = vld [vmem:[#allocation5 + $0x40] sm:$0xff]
    %v51 = vld [vmem:[#allocation5 + $0x48] sm:$0xff]
    %v52 = vld [vmem:[#allocation5 + $0x50] sm:$0xff]
    %v53 = vld [vmem:[#allocation5 + $0x58] sm:$0xff]
    %v54 = vld [vmem:[#allocation5 + $0x60] sm:$0xff]
    %v55 = vld [vmem:[#allocation5 + $0x68] sm:$0xff]
    %v56 = vld [vmem:[#allocation5 + $0x70] sm:$0xff]
    %v57 = vld [vmem:[#allocation5 + $0x78] sm:$0xff]
    %v58 = vld [vmem:[#allocation5 + $0x80] sm:$0xff]
    %v59 = vld [vmem:[#allocation5 + $0x88] sm:$0xff]
    %v60 = vld [vmem:[#allocation5 + $0x90] sm:$0xff]
    %v61 = vld [vmem:[#allocation5 + $0x98] sm:$0xff]
    %v62 = vld [vmem:[#allocation5 + $0xa0] sm:$0x1]
    %v63 = vld [vmem:[#allocation5 + $0xa1] sm:$0x1]
    %v64 = vld [vmem:[#allocation5 + $0xa2] sm:$0x1]
    %v65 = vld [vmem:[#allocation5 + $0xa3] sm:$0x1]
    %v66 = vld [vmem:[#allocation5 + $0xa4] sm:$0x1]
    %v67 = vld [vmem:[#allocation5 + $0xa8] sm:$0xff]
    %v68 = vld [vmem:[#allocation5 + $0xb0] sm:$0xff]
    %v69 = vlaneseq
    %v70 = vshrl.u32 %v69, 7
    %v71 = vsub.s32 0, %v70
    %v72 = vrot.slane %v62, %v71
    %vm73 = vcmask 523264
    %v75 = vsel %vm73, %v40, 0
    %v78 = vsel %vm73, %v41, 0
    %80 = vmatprep.subr.mxu0 0.0
    %81 = vmatpush1.msra.mxu0 %v42
    %82 = vmatprep.subr.mxu0 0.0
    %83 = vmatpush1.msra.mxu0 %v43
    %84 = vmatprep.subr.mxu0 0.0
    %85 = vmatpush1.msra.mxu0 %v44
    %86 = vmatprep.subr.mxu0 0.0
    %87 = vmatpush1.msra.mxu0 %v45
    %88 = vmatprep.subr.mxu0 0.0
    %89 = vmatpush1.msra.mxu0 %v46
    %90 = vmatprep.subr.mxu0 0.0
    %91 = vmatpush1.msra.mxu0 %v47
    %92 = vmatprep.subr.mxu0 0.0
    %93 = vmatpush1.msra.mxu0 %v48
    %94 = vmatprep.subr.mxu0 0.0
    %95 = vmatpush1.msra.mxu0 %v49
    %96 = vmatprep.subr.mxu0 0.0
    %97 = vmatpush1.msra.mxu0 0.0
    %98 = vmatprep.subr.mxu0 0.0
    %99 = vmatpush1.msra.mxu0 0.0
    %100 = vmatprep.subr.mxu0 0.0
    %101 = vmatpush1.msra.mxu0 0.0
    %102 = vmatprep.subr.mxu0 0.0
    %103 = vmatpush1.msra.mxu0 0.0
    %104 = vmatprep.subr.mxu0 0.0
    %105 = vmatpush1.msra.mxu0 0.0
    %106 = vmatprep.subr.mxu0 0.0
    %107 = vmatpush1.msra.mxu0 0.0
    %108 = vmatprep.subr.mxu0 0.0
    %109 = vmatpush1.msra.mxu0 0.0
    %110 = vmatprep.subr.mxu0 0.0
    %111 = vmatpush1.msra.mxu0 0.0
    %112 = vmatprep.subr.mxu0 0.0
    %113 = vmatpush1.msra.mxu0 0.0
    %114 = vmatprep.subr.mxu0 0.0
    %115 = vmatpush1.msra.mxu0 0.0
    %116 = vmatprep.subr.mxu0 0.0
    %117 = vmatpush1.msra.mxu0 0.0
    %118 = vmatprep.subr.mxu0 0.0
    %119 = vmatpush1.msra.mxu0 0.0
    %120 = vmatprep.subr.mxu0 0.0
    %121 = vmatpush1.msra.mxu0 0.0
    %122 = vmatprep.subr.mxu0 0.0
    %123 = vmatpush1.msra.mxu0 0.0
    %124 = vmatprep.subr.mxu0 0.0
    %125 = vmatpush1.msra.mxu0 0.0
    %126 = vmatprep.subr.mxu0 0.0
    %127 = vmatpush1.msra.mxu0 0.0
    %128 = vmatprep.subr.mxu0 0.0
    %129 = vmatpush1.msra.mxu0 0.0
    %130 = vmatprep.subr.mxu0 0.0
    %131 = vmatpush1.msra.mxu0 0.0
    %132 = vmatprep.subr.mxu0 0.0
    %133 = vmatpush1.msra.mxu0 0.0
    %134 = vmatprep.subr.mxu0 0.0
    %135 = vmatpush1.msra.mxu0 0.0
    %136 = vmatprep.subr.mxu0 0.0
    %137 = vmatpush1.msra.mxu0 0.0
    %138 = vmatprep.subr.mxu0 0.0
    %139 = vmatpush1.msra.mxu0 0.0
    %140 = vmatprep.subr.mxu0 0.0
    %141 = vmatpush1.msra.mxu0 0.0
    %142 = vmatprep.subr.mxu0 0.0
    %143 = vmatpush1.msra.mxu0 0.0
    %144 = vmatprep.mubr.f32.mxu0 0.0
    %145 = vmatmul.mubr.f32.gmra.mrb[0].mxu0 %v75
    %v146 = vpop.f32.mrb[0].mxu0
    %v147 = vadd.f32 %v72, %v146
    %v148 = vpop.f32.mrb[0].mxu0
    %149 = vmatprep.mubr.f32.mxu0 0.0
    %150 = vmatmul.mubr.f32.gmra.mrb[0].mxu0 %v78
    %v151 = vpop.f32.mrb[0].mxu0
    %v152 = vadd.f32 %v72, %v151
    %v153 = vpop.f32.mrb[0].mxu0
    %154 = vdwg.mxu0
    %vm155 = vcmask 261120
    %v156 = vsel %vm155, %v147, 0.0
    %157 = vadd.xlane.f32.xlu0 %v156
    %v158 = vpop.xlane.xlu0 %157
    %v159 = vsel %vm155, %v152, 0.0
    %160 = vadd.xlane.f32.xlu0 %v159
    %v161 = vpop.xlane.xlu0 %160
    %v162 = vrcp.pop 32.0
    %v163 = vmul.f32 %v158, %v162
    %v164 = vmul.f32 %v161, %v162
    %v165 = vsub.f32 %v147, %v163
    %v166 = vsub.f32 %v152, %v164
    %v167 = vmul.f32 %v165, %v165
    %v168 = vmul.f32 %v166, %v166
    %v169 = vsel %vm155, %v167, 0.0
    %170 = vadd.xlane.f32.xlu0 %v169
    %v171 = vpop.xlane.xlu0 %170
    %v172 = vsel %vm155, %v168, 0.0
    %173 = vadd.xlane.f32.xlu0 %v172
    %v174 = vpop.xlane.xlu0 %173
    %v175 = vmul.f32 %v171, %v162
    %v176 = vmul.f32 %v174, %v162
    %v177 = vadd.f32 %v175, 1e-05
    %v178 = vadd.f32 %v176, 1e-05
    %v179 = vrsqrt.pop %v177
    %v180 = vrsqrt.pop %v178
    %v181 = vmul.f32 %v165, %v179
    %v182 = vmul.f32 %v166, %v180
    %v183 = vlaneseq
    %v184 = vshrl.u32 %v183, 7
    %v185 = vsub.s32 0, %v184
    %v186 = vrot.slane %v63, %v185
    %v187 = vmul.f32 %v181, %v186
    %v188 = vmul.f32 %v182, %v186
    %v189 = vlaneseq
    %v190 = vshrl.u32 %v189, 7
    %v191 = vsub.s32 0, %v190
    %v192 = vrot.slane %v64, %v191
    %v193 = vadd.f32 %v187, %v192
    %v194 = vadd.f32 %v188, %v192
    %v195 = vmax.f32 %v193, 0.0
    %v196 = vmax.f32 %v194, 0.0
    %v197 = vlaneseq
    %v198 = vshrl.u32 %v197, 7
    %v199 = vsub.s32 0, %v198
    %v200 = vrot.slane %v65, %v199
    %v202 = vsel %vm155, %v195, 0
    %v205 = vsel %vm155, %v196, 0
    %207 = vmatprep.subr.mxu0 0.0
    %208 = vmatpush1.msra.mxu0 %v50
    %209 = vmatprep.subr.mxu0 0.0
    %210 = vmatpush1.msra.mxu0 %v51
    %211 = vmatprep.subr.mxu0 0.0
    %212 = vmatpush1.msra.mxu0 %v52
    %213 = vmatprep.subr.mxu0 0.0
    %214 = vmatpush1.msra.mxu0 %v53
    %215 = vmatprep.subr.mxu0 0.0
    %216 = vmatpush1.msra.mxu0 0.0
    %217 = vmatprep.subr.mxu0 0.0
    %218 = vmatpush1.msra.mxu0 0.0
    %219 = vmatprep.subr.mxu0 0.0
    %220 = vmatpush1.msra.mxu0 0.0
    %221 = vmatprep.subr.mxu0 0.0
    %222 = vmatpush1.msra.mxu0 0.0
    %223 = vmatprep.subr.mxu0 0.0
    %224 = vmatpush1.msra.mxu0 0.0
    %225 = vmatprep.subr.mxu0 0.0
    %226 = vmatpush1.msra.mxu0 0.0
    %227 = vmatprep.subr.mxu0 0.0
    %228 = vmatpush1.msra.mxu0 0.0
    %229 = vmatprep.subr.mxu0 0.0
    %230 = vmatpush1.msra.mxu0 0.0
    %231 = vmatprep.subr.mxu0 0.0
    %232 = vmatpush1.msra.mxu0 0.0
    %233 = vmatprep.subr.mxu0 0.0
    %234 = vmatpush1.msra.mxu0 0.0
    %235 = vmatprep.subr.mxu0 0.0
    %236 = vmatpush1.msra.mxu0 0.0
    %237 = vmatprep.subr.mxu0 0.0
    %238 = vmatpush1.msra.mxu0 0.0
    %239 = vmatprep.subr.mxu0 0.0
    %240 = vmatpush1.msra.mxu0 0.0
    %241 = vmatprep.subr.mxu0 0.0
    %242 = vmatpush1.msra.mxu0 0.0
    %243 = vmatprep.subr.mxu0 0.0
    %244 = vmatpush1.msra.mxu0 0.0
    %245 = vmatprep.subr.mxu0 0.0
    %246 = vmatpush1.msra.mxu0 0.0
    %247 = vmatprep.subr.mxu0 0.0
    %248 = vmatpush1.msra.mxu0 0.0
    %249 = vmatprep.subr.mxu0 0.0
    %250 = vmatpush1.msra.mxu0 0.0
    %251 = vmatprep.subr.mxu0 0.0
    %252 = vmatpush1.msra.mxu0 0.0
    %253 = vmatprep.subr.mxu0 0.0
    %254 = vmatpush1.msra.mxu0 0.0
    %255 = vmatprep.subr.mxu0 0.0
    %256 = vmatpush1.msra.mxu0 0.0
    %257 = vmatprep.subr.mxu0 0.0
    %258 = vmatpush1.msra.mxu0 0.0
    %259 = vmatprep.subr.mxu0 0.0
    %260 = vmatpush1.msra.mxu0 0.0
    %261 = vmatprep.subr.mxu0 0.0
    %262 = vmatpush1.msra.mxu0 0.0
    %263 = vmatprep.subr.mxu0 0.0
    %264 = vmatpush1.msra.mxu0 0.0
    %265 = vmatprep.subr.mxu0 0.0
    %266 = vmatpush1.msra.mxu0 0.0
    %267 = vmatprep.subr.mxu0 0.0
    %268 = vmatpush1.msra.mxu0 0.0
    %269 = vmatprep.subr.mxu0 0.0
    %270 = vmatpush1.msra.mxu0 0.0
    %271 = vmatprep.mubr.f32.mxu0 0.0
    %272 = vmatmul.mubr.f32.gmra.mrb[0].mxu0 %v202
    %v273 = vpop.f32.mrb[0].mxu0
    %v274 = vadd.f32 %v200, %v273
    %v275 = vpop.f32.mrb[0].mxu0
    %276 = vmatprep.mubr.f32.mxu0 0.0
    %277 = vmatmul.mubr.f32.gmra.mrb[0].mxu0 %v205
    %v278 = vpop.f32.mrb[0].mxu0
    %v279 = vadd.f32 %v200, %v278
    %v280 = vpop.f32.mrb[0].mxu0
    %281 = vdwg.mxu0
    %v282 = vmul.f32 %v274, %v274
    %v283 = vmul.f32 %v279, %v279
    %v284 = vsel %vm155, %v282, 0.0
    %285 = vadd.xlane.f32.xlu0 %v284
    %v286 = vpop.xlane.xlu0 %285
    %v287 = vsel %vm155, %v283, 0.0
    %288 = vadd.xlane.f32.xlu0 %v287
    %v289 = vpop.xlane.xlu0 %288
    %v290 = vmax.f32 %v286, 1e-24
    %v291 = vmax.f32 %v289, 1e-24
    %v292 = vrsqrt.pop %v290
    %v293 = vrsqrt.pop %v291
    %v294 = vmul.f32 %v292, 5.656854
    %v295 = vmul.f32 %v293, 5.656854
    %v296 = vmul.f32 %v274, %v294
    %v297 = vmul.f32 %v279, %v295
    %vm298 = vcmask 130048
    %v300 = vsel %vm298, %v67, 0
    %v303 = vsel %vm298, %v68, 0
    %305 = vmatprep.subr.mxu0 0.0
    %306 = vmatpush1.msra.mxu0 %v296
    %307 = vmatprep.subr.mxu0 0.0
    %308 = vmatpush1.msra.mxu0 %v297
    %309 = vmatprep.subr.mxu0 0.0
    %310 = vmatpush1.msra.mxu0 0.0
    %311 = vmatprep.subr.mxu0 0.0
    %312 = vmatpush1.msra.mxu0 0.0
    %313 = vmatprep.subr.mxu0 0.0
    %314 = vmatpush1.msra.mxu0 0.0
    %315 = vmatprep.subr.mxu0 0.0
    %316 = vmatpush1.msra.mxu0 0.0
    %317 = vmatprep.subr.mxu0 0.0
    %318 = vmatpush1.msra.mxu0 0.0
    %319 = vmatprep.subr.mxu0 0.0
    %320 = vmatpush1.msra.mxu0 0.0
    %321 = vmatprep.subr.mxu0 0.0
    %322 = vmatpush1.msra.mxu0 0.0
    %323 = vmatprep.subr.mxu0 0.0
    %324 = vmatpush1.msra.mxu0 0.0
    %325 = vmatprep.subr.mxu0 0.0
    %326 = vmatpush1.msra.mxu0 0.0
    %327 = vmatprep.subr.mxu0 0.0
    %328 = vmatpush1.msra.mxu0 0.0
    %329 = vmatprep.subr.mxu0 0.0
    %330 = vmatpush1.msra.mxu0 0.0
    %331 = vmatprep.subr.mxu0 0.0
    %332 = vmatpush1.msra.mxu0 0.0
    %333 = vmatprep.subr.mxu0 0.0
    %334 = vmatpush1.msra.mxu0 0.0
    %335 = vmatprep.subr.mxu0 0.0
    %336 = vmatpush1.msra.mxu0 0.0
    %337 = vmatprep.subr.mxu0 0.0
    %338 = vmatpush1.msra.mxu0 0.0
    %339 = vmatprep.subr.mxu0 0.0
    %340 = vmatpush1.msra.mxu0 0.0
    %341 = vmatprep.subr.mxu0 0.0
    %342 = vmatpush1.msra.mxu0 0.0
    %343 = vmatprep.subr.mxu0 0.0
    %344 = vmatpush1.msra.mxu0 0.0
    %345 = vmatprep.subr.mxu0 0.0
    %346 = vmatpush1.msra.mxu0 0.0
    %347 = vmatprep.subr.mxu0 0.0
    %348 = vmatpush1.msra.mxu0 0.0
    %349 = vmatprep.subr.mxu0 0.0
    %350 = vmatpush1.msra.mxu0 0.0
    %351 = vmatprep.subr.mxu0 0.0
    %352 = vmatpush1.msra.mxu0 0.0
    %353 = vmatprep.subr.mxu0 0.0
    %354 = vmatpush1.msra.mxu0 0.0
    %355 = vmatprep.subr.mxu0 0.0
    %356 = vmatpush1.msra.mxu0 0.0
    %357 = vmatprep.subr.mxu0 0.0
    %358 = vmatpush1.msra.mxu0 0.0
    %359 = vmatprep.subr.mxu0 0.0
    %360 = vmatpush1.msra.mxu0 0.0
    %361 = vmatprep.subr.mxu0 0.0
    %362 = vmatpush1.msra.mxu0 0.0
    %363 = vmatprep.subr.mxu0 0.0
    %364 = vmatpush1.msra.mxu0 0.0
    %365 = vmatprep.subr.mxu0 0.0
    %366 = vmatpush1.msra.mxu0 0.0
    %367 = vmatprep.subr.mxu0 0.0
    %368 = vmatpush1.msra.mxu0 0.0
    %369 = vmatprep.mubr.f32.mxu0 0.0
    %370 = vmatmul.mubr.f32.gmra.mrb[0].mxu0 %v300
    %v371 = vpop.f32.mrb[0].mxu0
    %v372 = vadd.f32 0.0, %v371
    %v373 = vpop.f32.mrb[0].mxu0
    %374 = vmatprep.mubr.f32.mxu0 0.0
    %375 = vmatmul.mubr.f32.gmra.mrb[0].mxu0 %v303
    %v376 = vpop.f32.mrb[0].mxu0
    %v377 = vadd.f32 0.0, %v376
    %v378 = vpop.f32.mrb[0].mxu0
    %379 = vdwg.mxu0
    %380 = vrot.lane.b32.xlu0 %v40, 32
    %v381 = vpop.permute.xlu0 %380
    %382 = vrot.lane.b32.xlu0 %v41, 32
    %v383 = vpop.permute.xlu0 %382
    %v386 = vsel %vm155, %v372, %v381
    %v387 = vsel %vm155, %v377, %v383
    %v388 = vlaneseq
    %v389 = vshrl.u32 %v388, 7
    %v390 = vsub.s32 0, %v389
    %v391 = vrot.slane %v66, %v390
    %v393 = vsel %vm73, %v386, 0
    %v396 = vsel %vm73, %v387, 0
    %398 = vmatprep.subr.mxu0 0.0
    %399 = vmatpush1.msra.mxu0 %v54
    %400 = vmatprep.subr.mxu0 0.0
    %401 = vmatpush1.msra.mxu0 %v55
    %402 = vmatprep.subr.mxu0 0.0
    %403 = vmatpush1.msra.mxu0 %v56
    %404 = vmatprep.subr.mxu0 0.0
    %405 = vmatpush1.msra.mxu0 %v57
    %406 = vmatprep.subr.mxu0 0.0
    %407 = vmatpush1.msra.mxu0 %v58
    %408 = vmatprep.subr.mxu0 0.0
    %409 = vmatpush1.msra.mxu0 %v59
    %410 = vmatprep.subr.mxu0 0.0
    %411 = vmatpush1.msra.mxu0 %v60
    %412 = vmatprep.subr.mxu0 0.0
    %413 = vmatpush1.msra.mxu0 %v61
    %414 = vmatprep.subr.mxu0 0.0
    %415 = vmatpush1.msra.mxu0 0.0
    %416 = vmatprep.subr.mxu0 0.0
    %417 = vmatpush1.msra.mxu0 0.0
    %418 = vmatprep.subr.mxu0 0.0
    %419 = vmatpush1.msra.mxu0 0.0
    %420 = vmatprep.subr.mxu0 0.0
    %421 = vmatpush1.msra.mxu0 0.0
    %422 = vmatprep.subr.mxu0 0.0
    %423 = vmatpush1.msra.mxu0 0.0
    %424 = vmatprep.subr.mxu0 0.0
    %425 = vmatpush1.msra.mxu0 0.0
    %426 = vmatprep.subr.mxu0 0.0
    %427 = vmatpush1.msra.mxu0 0.0
    %428 = vmatprep.subr.mxu0 0.0
    %429 = vmatpush1.msra.mxu0 0.0
    %430 = vmatprep.subr.mxu0 0.0
    %431 = vmatpush1.msra.mxu0 0.0
    %432 = vmatprep.subr.mxu0 0.0
    %433 = vmatpush1.msra.mxu0 0.0
    %434 = vmatprep.subr.mxu0 0.0
    %435 = vmatpush1.msra.mxu0 0.0
    %436 = vmatprep.subr.mxu0 0.0
    %437 = vmatpush1.msra.mxu0 0.0
    %438 = vmatprep.subr.mxu0 0.0
    %439 = vmatpush1.msra.mxu0 0.0
    %440 = vmatprep.subr.mxu0 0.0
    %441 = vmatpush1.msra.mxu0 0.0
    %442 = vmatprep.subr.mxu0 0.0
    %443 = vmatpush1.msra.mxu0 0.0
    %444 = vmatprep.subr.mxu0 0.0
    %445 = vmatpush1.msra.mxu0 0.0
    %446 = vmatprep.subr.mxu0 0.0
    %447 = vmatpush1.msra.mxu0 0.0
    %448 = vmatprep.subr.mxu0 0.0
    %449 = vmatpush1.msra.mxu0 0.0
    %450 = vmatprep.subr.mxu0 0.0
    %451 = vmatpush1.msra.mxu0 0.0
    %452 = vmatprep.subr.mxu0 0.0
    %453 = vmatpush1.msra.mxu0 0.0
    %454 = vmatprep.subr.mxu0 0.0
    %455 = vmatpush1.msra.mxu0 0.0
    %456 = vmatprep.subr.mxu0 0.0
    %457 = vmatpush1.msra.mxu0 0.0
    %458 = vmatprep.subr.mxu0 0.0
    %459 = vmatpush1.msra.mxu0 0.0
    %460 = vmatprep.subr.mxu0 0.0
    %461 = vmatpush1.msra.mxu0 0.0
    %462 = vmatprep.mubr.f32.mxu0 0.0
    %463 = vmatmul.mubr.f32.gmra.mrb[0].mxu0 %v393
    %v464 = vpop.f32.mrb[0].mxu0
    %v465 = vadd.f32 %v391, %v464
    %v466 = vpop.f32.mrb[0].mxu0
    %467 = vmatprep.mubr.f32.mxu0 0.0
    %468 = vmatmul.mubr.f32.gmra.mrb[0].mxu0 %v396
    %v469 = vpop.f32.mrb[0].mxu0
    %v470 = vadd.f32 %v391, %v469
    %v471 = vpop.f32.mrb[0].mxu0
    %472 = vdwg.mxu0
    %v473 = vtanh.pop %v465
    %v474 = vtanh.pop %v470
    %v475 = vmul.f32 %v473, %v473
    %v476 = vmul.f32 %v474, %v474
    %v477 = vsel %vm73, %v475, 0.0
    %478 = vadd.xlane.f32.xlu0 %v477
    %v479 = vpop.xlane.xlu0 %478
    %v480 = vsel %vm73, %v476, 0.0
    %481 = vadd.xlane.f32.xlu0 %v480
    %v482 = vpop.xlane.xlu0 %481
    %v483 = vrsqrt.pop %v479
    %v484 = vmul.f32 %v479, %v483
    %vm485 = vcmp.eq.f32.partialorder %v479, inf
    %v486 = vsel %vm485, %v479, %v484
    %vm487 = vcmp.eq.f32.partialorder %v479, 0.0
    %v488 = vand.u32 %v479, 2147483648
    %v489 = vsel %vm487, %v488, %v486
    %v490 = vrsqrt.pop %v482
    %v491 = vmul.f32 %v482, %v490
    %vm492 = vcmp.eq.f32.partialorder %v482, inf
    %v493 = vsel %vm492, %v482, %v491
    %vm494 = vcmp.eq.f32.partialorder %v482, 0.0
    %v495 = vand.u32 %v482, 2147483648
    %v496 = vsel %vm494, %v495, %v493
    %v497 = vadd.f32 %v489, 1e-08
    %v498 = vadd.f32 %v496, 1e-08
    %v499 = vrcp.pop %v497
    %v500 = vmul.f32 5.0, %v499
    %v501 = vrcp.pop %v498
    %v502 = vmul.f32 5.0, %v501
    %v503 = vmin.f32 %v500, 1.0
    %v504 = vmin.f32 %v502, 1.0
    %v505 = vmul.f32 %v473, %v503
    %v506 = vmul.f32 %v474, %v504
    %vm507 = vcmp.ne.f32.partialorder %v505, %v505
    %vm508 = vcmp.ne.f32.partialorder %v506, %v506
    %v509 = vsel %vm507, 0.0, %v505
    %v510 = vsel %vm508, 0.0, %v506
    %511 = vst.msk [vmem:[#allocation7] sm:$0xff] %vm73, %v509
    %512 = vst.msk [vmem:[#allocation7 + $0x8] sm:$0xff] %vm73, %v510
    // Predicated region
    $region18: #{func.1} parent=1 // pred_check
      _
    $region19: #{func.1} parent=1 // pred_check_branch
      %514 = sbr.rel (0) target = $region21
    $region20: #{func.1} parent=1 // pred_region
      %s516 = ssub.s32 256, 256
      %517 = vsyncadd [#allocation4], %s516
      %s518 = sshll.u32 [#allocation7], 4
      %s519 = int_to_ptr.vmem [resolvable:$true] %s518
      %524 = dma.vmem_to_hbm [thread:$0]  %s519, 256, %s2, [#allocation4], 128, 128, 8
    $region21: #{func.1} parent=1 // pred_fallthru
      _
    // Predicated region
    $region22: #{func.1} parent=1 // pred_check
      _
    $region23: #{func.1} parent=1 // pred_check_branch
      %526 = sbr.rel (0) target = $region25
    $region24: #{func.1} parent=1 // pred_region
      %527 = dma.done [#allocation4], 256
    $region25: #{func.1} parent=1 // pred_fallthru
      _
    %528 = vsyncpa [#allocation3], 1
    %529 = vsyncpa [#allocation6], 1
    %530 = vsyncpa [#allocation4], 1

</llo_original>
